<compile_context>
chip_gen: v7x
topology: tpu7x:2x2x1
jax: 0.10.0
libtpu: 0.0.40
codegen_flags: <defaults>
</compile_context>

<pallas_src>
import math

import jax
import jax.numpy as jnp
from jax.experimental import pallas as pl
from jax.experimental.pallas import tpu as pltpu

COMMUNICATION_RATE = 4.0 / 7.0
TRAINING_SNR = 5.01187
NOISE_SCALE = 1.0 / math.sqrt(2.0 * COMMUNICATION_RATE * TRAINING_SNR)
BN_EPS = 1e-5


def rtn_kernel(x_ref, noise_ref, w_ref, b_ref, out_ref):
    x = x_ref[...]                                         # (B, P), zero-padded features
    B, P = x.shape

    b1, b2 = b_ref[0:1, :], b_ref[1:2, :]
    gamma, beta = b_ref[2:3, :], b_ref[3:4, :]
    b3, b4 = b_ref[4:5, :], b_ref[5:6, :]

    # ---- encoder: Linear -> ReLU -> Linear -> BatchNorm1d (training stats) ----
    h1 = jnp.maximum(
        jnp.dot(x, w_ref[0], preferred_element_type=jnp.float32) + b1, 0.0)
    h2 = jnp.dot(h1, w_ref[1], preferred_element_type=jnp.float32) + b2

    # BatchNorm folded into one fused scale/shift (biased batch variance, eps=1e-5).
    mean = jnp.mean(h2, axis=0, keepdims=True)                        # (1, P)
    var = jnp.mean(h2 * h2, axis=0, keepdims=True) - mean * mean      # biased var
    scale = gamma * jax.lax.rsqrt(var + BN_EPS)
    shift = beta - mean * scale
    h2 = h2 * scale + shift

    # ---- AWGN channel (noise pre-scaled; padded columns are zero) ----
    h2 = h2 + noise_ref[...]

    # ---- decoder: Linear -> ReLU -> Linear ----
    h3 = jnp.maximum(
        jnp.dot(h2, w_ref[2], preferred_element_type=jnp.float32) + b3, 0.0)
    y = jnp.dot(h3, w_ref[3], preferred_element_type=jnp.float32) + b4

    out_cols = out_ref.shape[1]
    out_ref[...] = (y if out_cols == P else y[:, :out_cols]).astype(out_ref.dtype)


def radio_transformer_forward(x, noise_key, w_slab, b_slab, compressed_dim):
    """x: (B, in_channels) f32; noise_key: jax PRNG key; slabs from pack_params()."""
    B, in_ch = x.shape
    n_w, P, P2 = w_slab.shape
    assert n_w == 4 and P == P2 and b_slab.shape == (8, P) and in_ch <= P

    # BatchNorm reduces over the whole batch, so the whole batch must be resident in a
    # single block (one grid point).  Keep live activations well inside VMEM.
    assert 6 * B * P * 4 < 16 * 1024 * 1024, (
        "batch too large for single-block BatchNorm; needs a 2-pass stats/normalize kernel")
    # TODO(synk): large-batch variant = pass 1 accumulating sum/sumsq over an 'arbitrary'
    #             batch-tile axis, pass 2 normalize+decode (keeps BN global & correct).

    if in_ch < P:
        x = jnp.pad(x, ((0, 0), (0, P - in_ch)))

    # AWGN noise, same distribution / scale as torch.randn(...) / sqrt(2*R*SNR).
    # Generated on the real compressed_dim columns only; padded columns stay zero.
    noise = jax.random.normal(noise_key, (B, compressed_dim), jnp.float32) * NOISE_SCALE
    if compressed_dim < P:
        noise = jnp.pad(noise, ((0, 0), (0, P - compressed_dim)))

    vmem = pl.BlockSpec(memory_space=pltpu.MemorySpace.VMEM)

    return pl.pallas_call(
        rtn_kernel,
        out_shape=jax.ShapeDtypeStruct((B, in_ch), jnp.float32),
        in_specs=[vmem, vmem, vmem, vmem],
        out_specs=vmem,
    )(x, noise, w_slab, b_slab)


def init_params(key, in_channels, compressed_dim):
    """PyTorch-style Linear init; weights stored pre-transposed as (in_dim, out_dim)."""
    def linear(key, fan_in, fan_out):
        kw, kb = jax.random.split(key)
        bound = 1.0 / math.sqrt(fan_in)
        w = jax.random.uniform(kw, (fan_in, fan_out), jnp.float32, -bound, bound)
        b = jax.random.uniform(kb, (fan_out,), jnp.float32, -bound, bound)
        return w, b

    k1, k2, k3, k4 = jax.random.split(key, 4)
    w1, b1 = linear(k1, in_channels, in_channels)
    w2, b2 = linear(k2, in_channels, compressed_dim)
    gamma = jnp.ones((compressed_dim,), jnp.float32)   # BatchNorm1d default affine
    beta = jnp.zeros((compressed_dim,), jnp.float32)
    w3, b3 = linear(k3, compressed_dim, compressed_dim)
    w4, b4 = linear(k4, compressed_dim, in_channels)
    return (w1, b1, w2, b2, gamma, beta, w3, b3, w4, b4)


def pack_params(params, in_channels, compressed_dim):
    """Pack the 10 parameter tensors into 2 padded slabs (done once, outside the hot path)."""
    w1, b1, w2, b2, gamma, beta, w3, b3, w4, b4 = params
    P = -(-max(in_channels, compressed_dim) // 8) * 8     # pad to multiple of 8 sublanes

    def pad_w(w):
        k, n = w.shape
        return jnp.pad(w, ((0, P - k), (0, P - n)))

    def pad_v(v):
        v = jnp.reshape(v, (-1,))
        return jnp.pad(v, (0, P - v.shape[0]))

    w_slab = jnp.stack([pad_w(w1), pad_w(w2), pad_w(w3), pad_w(w4)])          # (4, P, P)
    zeros = jnp.zeros((P,), jnp.float32)
    b_slab = jnp.stack([pad_v(b1), pad_v(b2), pad_v(gamma), pad_v(beta),
                        pad_v(b3), pad_v(b4), zeros, zeros])                   # (8, P)
    return w_slab, b_slab


if __name__ == "__main__":
    # (7,4) Hamming-style autoencoder shapes: 16 messages, 7 channel uses.
    batch = 8
    in_channels = 16
    compressed_dim = 7

    key = jax.random.PRNGKey(0)
    k_params, k_x, k_noise = jax.random.split(key, 3)

    params = init_params(k_params, in_channels, compressed_dim)
    w_slab, b_slab = pack_params(params, in_channels, compressed_dim)
    w_slab = jax.device_put(w_slab)
    b_slab = jax.device_put(b_slab)

    x = jax.random.normal(k_x, (batch, in_channels), jnp.float32)

    out = radio_transformer_forward(x, k_noise, w_slab, b_slab, compressed_dim)
    jax.block_until_ready(out)

    assert out.shape == (batch, in_channels) and out.dtype == jnp.float32
    assert bool(jnp.all(jnp.isfinite(out)))
    print("KERNEL_OK")
</pallas_src>

<mosaic_0001>
module attributes {stable_mosaic.version = 11 : i64} {
  func.func @rtn_kernel(%arg0: memref<8x16xf32, #tpu.memory_space<vmem>>, %arg1: memref<8x16xf32, #tpu.memory_space<vmem>>, %arg2: memref<4x16x16xf32, #tpu.memory_space<vmem>>, %arg3: memref<8x16xf32, #tpu.memory_space<vmem>>, %arg4: memref<8x16xf32, #tpu.memory_space<vmem>>) attributes {dimension_semantics = [], scalar_prefetch = 0 : i64, scratch_operands = 0 : i64, tpu.core_type = #tpu.core_type<tc>} {
    %c0 = arith.constant 0 : index
    %c0_0 = arith.constant 0 : index
    %0 = vector.load %arg0[%c0, %c0_0] : memref<8x16xf32, #tpu.memory_space<vmem>>, vector<8x16xf32>
    %c0_1 = arith.constant 0 : index
    %c0_2 = arith.constant 0 : index
    %1 = vector.load %arg3[%c0_1, %c0_2] : memref<8x16xf32, #tpu.memory_space<vmem>>, vector<1x16xf32>
    %c1 = arith.constant 1 : index
    %c0_3 = arith.constant 0 : index
    %2 = vector.load %arg3[%c1, %c0_3] : memref<8x16xf32, #tpu.memory_space<vmem>>, vector<1x16xf32>
    %c2 = arith.constant 2 : index
    %c0_4 = arith.constant 0 : index
    %3 = vector.load %arg3[%c2, %c0_4] : memref<8x16xf32, #tpu.memory_space<vmem>>, vector<1x16xf32>
    %c3 = arith.constant 3 : index
    %c0_5 = arith.constant 0 : index
    %4 = vector.load %arg3[%c3, %c0_5] : memref<8x16xf32, #tpu.memory_space<vmem>>, vector<1x16xf32>
    %c4 = arith.constant 4 : index
    %c0_6 = arith.constant 0 : index
    %5 = vector.load %arg3[%c4, %c0_6] : memref<8x16xf32, #tpu.memory_space<vmem>>, vector<1x16xf32>
    %c5 = arith.constant 5 : index
    %c0_7 = arith.constant 0 : index
    %6 = vector.load %arg3[%c5, %c0_7] : memref<8x16xf32, #tpu.memory_space<vmem>>, vector<1x16xf32>
    %c0_8 = arith.constant 0 : index
    %c0_9 = arith.constant 0 : index
    %c0_10 = arith.constant 0 : index
    %7 = vector.load %arg2[%c0_8, %c0_9, %c0_10] : memref<4x16x16xf32, #tpu.memory_space<vmem>>, vector<1x16x16xf32>
    %8 = vector.shape_cast %7 : vector<1x16x16xf32> to vector<16x16xf32>
    %cst = arith.constant dense<0.000000e+00> : vector<8x16xf32>
    %9 = tpu.matmul %0, %8, %cst {dimension_numbers = #tpu.dot_dimension_numbers<[1], [0], [0], [1], [0, 0, 1, 1], [], []>} : vector<8x16xf32>, vector<16x16xf32>, vector<8x16xf32> -> vector<8x16xf32>
    %10 = vector.broadcast %1 : vector<1x16xf32> to vector<8x16xf32>
    %11 = arith.addf %9, %10 : vector<8x16xf32>
    %cst_11 = arith.constant 0.000000e+00 : f32
    %12 = vector.broadcast %cst_11 : f32 to vector<8x16xf32>
    %13 = arith.maximumf %11, %12 : vector<8x16xf32>
    %c1_12 = arith.constant 1 : index
    %c0_13 = arith.constant 0 : index
    %c0_14 = arith.constant 0 : index
    %14 = vector.load %arg2[%c1_12, %c0_13, %c0_14] : memref<4x16x16xf32, #tpu.memory_space<vmem>>, vector<1x16x16xf32>
    %15 = vector.shape_cast %14 : vector<1x16x16xf32> to vector<16x16xf32>
    %cst_15 = arith.constant dense<0.000000e+00> : vector<8x16xf32>
    %16 = tpu.matmul %13, %15, %cst_15 {dimension_numbers = #tpu.dot_dimension_numbers<[1], [0], [0], [1], [0, 0, 1, 1], [], []>} : vector<8x16xf32>, vector<16x16xf32>, vector<8x16xf32> -> vector<8x16xf32>
    %17 = vector.broadcast %2 : vector<1x16xf32> to vector<8x16xf32>
    %18 = arith.addf %16, %17 : vector<8x16xf32>
    %cst_16 = arith.constant dense<0.000000e+00> : vector<16xf32>
    %19 = vector.multi_reduction <add>, %18, %cst_16 [0] : vector<8x16xf32> to vector<16xf32>
    %20 = vector.shape_cast %19 : vector<16xf32> to vector<1x16xf32>
    %cst_17 = arith.constant 8.000000e+00 : f32
    %21 = vector.broadcast %cst_17 : f32 to vector<1x16xf32>
    %22 = arith.divf %20, %21 : vector<1x16xf32>
    %23 = arith.mulf %18, %18 : vector<8x16xf32>
    %cst_18 = arith.constant dense<0.000000e+00> : vector<16xf32>
    %24 = vector.multi_reduction <add>, %23, %cst_18 [0] : vector<8x16xf32> to vector<16xf32>
    %25 = vector.shape_cast %24 : vector<16xf32> to vector<1x16xf32>
    %cst_19 = arith.constant 8.000000e+00 : f32
    %26 = vector.broadcast %cst_19 : f32 to vector<1x16xf32>
    %27 = arith.divf %25, %26 : vector<1x16xf32>
    %28 = arith.mulf %22, %22 : vector<1x16xf32>
    %29 = arith.subf %27, %28 : vector<1x16xf32>
    %cst_20 = arith.constant 9.99999974E-6 : f32
    %30 = vector.broadcast %cst_20 : f32 to vector<1x16xf32>
    %31 = arith.addf %29, %30 : vector<1x16xf32>
    %32 = math.rsqrt %31 : vector<1x16xf32>
    %33 = arith.mulf %3, %32 : vector<1x16xf32>
    %34 = arith.mulf %22, %33 : vector<1x16xf32>
    %35 = arith.subf %4, %34 : vector<1x16xf32>
    %36 = vector.broadcast %33 : vector<1x16xf32> to vector<8x16xf32>
    %37 = arith.mulf %18, %36 : vector<8x16xf32>
    %38 = vector.broadcast %35 : vector<1x16xf32> to vector<8x16xf32>
    %39 = arith.addf %37, %38 : vector<8x16xf32>
    %c0_21 = arith.constant 0 : index
    %c0_22 = arith.constant 0 : index
    %40 = vector.load %arg1[%c0_21, %c0_22] : memref<8x16xf32, #tpu.memory_space<vmem>>, vector<8x16xf32>
    %41 = arith.addf %39, %40 : vector<8x16xf32>
    %c2_23 = arith.constant 2 : index
    %c0_24 = arith.constant 0 : index
    %c0_25 = arith.constant 0 : index
    %42 = vector.load %arg2[%c2_23, %c0_24, %c0_25] : memref<4x16x16xf32, #tpu.memory_space<vmem>>, vector<1x16x16xf32>
    %43 = vector.shape_cast %42 : vector<1x16x16xf32> to vector<16x16xf32>
    %cst_26 = arith.constant dense<0.000000e+00> : vector<8x16xf32>
    %44 = tpu.matmul %41, %43, %cst_26 {dimension_numbers = #tpu.dot_dimension_numbers<[1], [0], [0], [1], [0, 0, 1, 1], [], []>} : vector<8x16xf32>, vector<16x16xf32>, vector<8x16xf32> -> vector<8x16xf32>
    %45 = vector.broadcast %5 : vector<1x16xf32> to vector<8x16xf32>
    %46 = arith.addf %44, %45 : vector<8x16xf32>
    %cst_27 = arith.constant 0.000000e+00 : f32
    %47 = vector.broadcast %cst_27 : f32 to vector<8x16xf32>
    %48 = arith.maximumf %46, %47 : vector<8x16xf32>
    %c3_28 = arith.constant 3 : index
    %c0_29 = arith.constant 0 : index
    %c0_30 = arith.constant 0 : index
    %49 = vector.load %arg2[%c3_28, %c0_29, %c0_30] : memref<4x16x16xf32, #tpu.memory_space<vmem>>, vector<1x16x16xf32>
    %50 = vector.shape_cast %49 : vector<1x16x16xf32> to vector<16x16xf32>
    %cst_31 = arith.constant dense<0.000000e+00> : vector<8x16xf32>
    %51 = tpu.matmul %48, %50, %cst_31 {dimension_numbers = #tpu.dot_dimension_numbers<[1], [0], [0], [1], [0, 0, 1, 1], [], []>} : vector<8x16xf32>, vector<16x16xf32>, vector<8x16xf32> -> vector<8x16xf32>
    %52 = vector.broadcast %6 : vector<1x16xf32> to vector<8x16xf32>
    %53 = arith.addf %51, %52 : vector<8x16xf32>
    %c0_32 = arith.constant 0 : index
    %c0_33 = arith.constant 0 : index
    %54 = vector.load %arg4[%c0_32, %c0_33] : memref<8x16xf32, #tpu.memory_space<vmem>>, vector<8x16xf32>
    tpu.vector_store %arg4[%c0_32, %c0_33], %53 {strides = array<i32>} : memref<8x16xf32, #tpu.memory_space<vmem>>, vector<8x16xf32>,
    return
  }
}

</mosaic_0001>

<llo_original>
// kernel: tpu_custom_call.1
$region0: #{tpu_custom_call.1}
  #allocation0 [shape = 'u32[]', space=smem, size = 0x4, offset = 0x4, fixed_abs, tag = 'smem constant byte address 0x4 - core index']
  #allocation1 [shape = 'u32[144,128]{1,0:T(1,128)}', space=vmem, size = 0x12000, scoped, tag = 'internal scratch']
  %s0 = inlined_call_operand.hbm [shape: f32[8,16], index: 0, kind: input, shape index: {}]
  %s1 = inlined_call_operand.hbm [shape: f32[8,16], index: 1, kind: input, shape index: {}]
  %s2 = inlined_call_operand.hbm [shape: f32[4,16,16], index: 2, kind: input, shape index: {}]
  %s3 = inlined_call_operand.vmem [shape: f32[8,16], index: 3, kind: input, shape index: {}]
  %s4 = inlined_call_operand.hbm [shape: f32[8,16], index: 4, kind: output, shape index: {}]
  %s5 = sld [smem:[#allocation0]]
  $region38: #{tpu_custom_call.1} parent=0
    _
  %s7 = ssub.s32 1, %s5
  %s8 = scalar_select 0, %s7, %s5
  $region1: #{tpu_custom_call.1} parent=0
    #allocation2 [shape = 'u8[4096]{0}', space=vmem, size = 0x1000, scoped, tag = 'input window, operand 0, single buffered']
    #allocation3 [shape = 's32[1]{0}', space=sflag, size = 0x4, scoped, tag = 'scoped memory for tpu_custom_call.1']
    #allocation4 [shape = 's32[1]{0}', space=sflag, size = 0x4, scoped, tag = 'scoped memory for tpu_custom_call.1']
    #allocation5 [shape = 'u8[4096]{0}', space=vmem, size = 0x1000, scoped, tag = 'input window, operand 1, single buffered']
    #allocation6 [shape = 's32[1]{0}', space=sflag, size = 0x4, scoped, tag = 'scoped memory for tpu_custom_call.1']
    #allocation7 [shape = 'u8[32768]{0}', space=vmem, size = 0x8000, scoped, tag = 'input window, operand 2, single buffered']
    #allocation8 [shape = 'u8[4096]{0}', space=vmem, size = 0x1000, scoped, tag = 'output window, operand 0, single buffered']
    %9 = vsyncpa [#allocation3], 0
    %10 = vsyncpa [#allocation6], 0
    %11 = vsyncpa [#allocation4], 0
    // Predicated region
    $region2: #{tpu_custom_call.1} parent=1 // pred_check
      _
    $region3: #{tpu_custom_call.1} parent=1 // pred_check_branch
      %13 = sbr.rel (0) target = $region5
    $region4: #{tpu_custom_call.1} parent=1 // pred_region
      %s15 = ssub.s32 128, 128
      %16 = vsyncadd [#allocation3], %s15
      %s18 = sshll.u32 [#allocation2], 4
      %s19 = int_to_ptr.vmem [resolvable:$true] %s18
      %21 = dma.hbm_to_vmem [thread:$0]  %s0, 128, %s19, [#allocation3]
    $region5: #{tpu_custom_call.1} parent=1 // pred_fallthru
      _
    // Predicated region
    $region6: #{tpu_custom_call.1} parent=1 // pred_check
      _
    $region7: #{tpu_custom_call.1} parent=1 // pred_check_branch
      %23 = sbr.rel (0) target = $region9
    $region8: #{tpu_custom_call.1} parent=1 // pred_region
      %s25 = ssub.s32 128, 128
      %26 = vsyncadd [#allocation6], %s25
      %s28 = sshll.u32 [#allocation5], 4
      %s29 = int_to_ptr.vmem [resolvable:$true] %s28
      %31 = dma.hbm_to_vmem [thread:$0]  %s1, 128, %s29, [#allocation6]
    $region9: #{tpu_custom_call.1} parent=1 // pred_fallthru
      _
    // Predicated region
    $region10: #{tpu_custom_call.1} parent=1 // pred_check
      _
    $region11: #{tpu_custom_call.1} parent=1 // pred_check_branch
      %33 = sbr.rel (0) target = $region13
    $region12: #{tpu_custom_call.1} parent=1 // pred_region
      %s35 = ssub.s32 1024, 1024
      %36 = vsyncadd [#allocation6], %s35
      %s37 = sshll.u32 [#allocation7], 4
      %s38 = int_to_ptr.vmem [resolvable:$true] %s37
      %43 = dma.hbm_to_vmem [thread:$0]  %s2, 1024, %s38, [#allocation6], 128, 128, 8
    $region13: #{tpu_custom_call.1} parent=1 // pred_fallthru
      _
    // Predicated region
    $region14: #{tpu_custom_call.1} parent=1 // pred_check
      _
    $region15: #{tpu_custom_call.1} parent=1 // pred_check_branch
      %45 = sbr.rel (0) target = $region17
    $region16: #{tpu_custom_call.1} parent=1 // pred_region
      _
    $region17: #{tpu_custom_call.1} parent=1 // pred_fallthru
      _
    // Predicated region
    $region18: #{tpu_custom_call.1} parent=1 // pred_check
      _
    $region19: #{tpu_custom_call.1} parent=1 // pred_check_branch
      %47 = sbr.rel (0) target = $region21
    $region20: #{tpu_custom_call.1} parent=1 // pred_region
      %48 = dma.done [#allocation3], 128
    $region21: #{tpu_custom_call.1} parent=1 // pred_fallthru
      _
    // Predicated region
    $region22: #{tpu_custom_call.1} parent=1 // pred_check
      _
    $region23: #{tpu_custom_call.1} parent=1 // pred_check_branch
      %50 = sbr.rel (0) target = $region25
    $region24: #{tpu_custom_call.1} parent=1 // pred_region
      %51 = dma.done [#allocation6], 128
    $region25: #{tpu_custom_call.1} parent=1 // pred_fallthru
      _
    // Predicated region
    $region26: #{tpu_custom_call.1} parent=1 // pred_check
      _
    $region27: #{tpu_custom_call.1} parent=1 // pred_check_branch
      %53 = sbr.rel (0) target = $region29
    $region28: #{tpu_custom_call.1} parent=1 // pred_region
      %54 = dma.done [#allocation6], 1024
    $region29: #{tpu_custom_call.1} parent=1 // pred_fallthru
      _
    %v55 = vld [vmem:[#allocation2] sm:$0xff]
    %v56 = vld [vmem:[%s3] sm:$0x1]
    %v57 = vld [vmem:[%s3 + $0x1] sm:$0x1]
    %v58 = vld [vmem:[%s3 + $0x2] sm:$0x1]
    %v59 = vld [vmem:[%s3 + $0x3] sm:$0x1]
    %v60 = vld [vmem:[%s3 + $0x4] sm:$0x1]
    %v61 = vld [vmem:[%s3 + $0x5] sm:$0x1]
    %v62 = vld [vmem:[#allocation7] sm:$0xff]
    %v63 = vld [vmem:[#allocation7 + $0x8] sm:$0xff]
    %v64 = vlaneseq
    %v65 = vshrl.u32 %v64, 7
    %v66 = vsub.s32 0, %v65
    %v67 = vrot.slane %v56, %v66
    %vm68 = vcmask 130048
    %v70 = vsel %vm68, %v55, 0
    %72 = vmatprep.subr.mxu0 0.0
    %73 = vmatpush1.msra.mxu0 %v62
    %74 = vmatprep.subr.mxu0 0.0
    %75 = vmatpush1.msra.mxu0 %v63
    %76 = vmatprep.subr.mxu0 0.0
    %77 = vmatpush1.msra.mxu0 0.0
    %78 = vmatprep.subr.mxu0 0.0
    %79 = vmatpush1.msra.mxu0 0.0
    %80 = vmatprep.subr.mxu0 0.0
    %81 = vmatpush1.msra.mxu0 0.0
    %82 = vmatprep.subr.mxu0 0.0
    %83 = vmatpush1.msra.mxu0 0.0
    %84 = vmatprep.subr.mxu0 0.0
    %85 = vmatpush1.msra.mxu0 0.0
    %86 = vmatprep.subr.mxu0 0.0
    %87 = vmatpush1.msra.mxu0 0.0
    %88 = vmatprep.subr.mxu0 0.0
    %89 = vmatpush1.msra.mxu0 0.0
    %90 = vmatprep.subr.mxu0 0.0
    %91 = vmatpush1.msra.mxu0 0.0
    %92 = vmatprep.subr.mxu0 0.0
    %93 = vmatpush1.msra.mxu0 0.0
    %94 = vmatprep.subr.mxu0 0.0
    %95 = vmatpush1.msra.mxu0 0.0
    %96 = vmatprep.subr.mxu0 0.0
    %97 = vmatpush1.msra.mxu0 0.0
    %98 = vmatprep.subr.mxu0 0.0
    %99 = vmatpush1.msra.mxu0 0.0
    %100 = vmatprep.subr.mxu0 0.0
    %101 = vmatpush1.msra.mxu0 0.0
    %102 = vmatprep.subr.mxu0 0.0
    %103 = vmatpush1.msra.mxu0 0.0
    %104 = vmatprep.subr.mxu0 0.0
    %105 = vmatpush1.msra.mxu0 0.0
    %106 = vmatprep.subr.mxu0 0.0
    %107 = vmatpush1.msra.mxu0 0.0
    %108 = vmatprep.subr.mxu0 0.0
    %109 = vmatpush1.msra.mxu0 0.0
    %110 = vmatprep.subr.mxu0 0.0
    %111 = vmatpush1.msra.mxu0 0.0
    %112 = vmatprep.subr.mxu0 0.0
    %113 = vmatpush1.msra.mxu0 0.0
    %114 = vmatprep.subr.mxu0 0.0
    %115 = vmatpush1.msra.mxu0 0.0
    %116 = vmatprep.subr.mxu0 0.0
    %117 = vmatpush1.msra.mxu0 0.0
    %118 = vmatprep.subr.mxu0 0.0
    %119 = vmatpush1.msra.mxu0 0.0
    %120 = vmatprep.subr.mxu0 0.0
    %121 = vmatpush1.msra.mxu0 0.0
    %122 = vmatprep.subr.mxu0 0.0
    %123 = vmatpush1.msra.mxu0 0.0
    %124 = vmatprep.subr.mxu0 0.0
    %125 = vmatpush1.msra.mxu0 0.0
    %126 = vmatprep.subr.mxu0 0.0
    %127 = vmatpush1.msra.mxu0 0.0
    %128 = vmatprep.subr.mxu0 0.0
    %129 = vmatpush1.msra.mxu0 0.0
    %130 = vmatprep.subr.mxu0 0.0
    %131 = vmatpush1.msra.mxu0 0.0
    %132 = vmatprep.subr.mxu0 0.0
    %133 = vmatpush1.msra.mxu0 0.0
    %134 = vmatprep.subr.mxu0 0.0
    %135 = vmatpush1.msra.mxu0 0.0
    %136 = vmatprep.mubr.f32.mxu0 0.0
    %137 = vmatmul.mubr.f32.gmra.mrb[0].mxu0 %v70
    %v138 = vpop.f32.mrb[0].mxu0
    %v139 = vadd.f32 %v67, %v138
    %v140 = vpop.f32.mrb[0].mxu0
    %141 = vdwg.mxu0
    %v142 = vmax.f32 %v139, 0.0
    %s143 = scalar_lea.vmem [#allocation7], 16
    %v144 = vld [vmem:[%s143] sm:$0xff]
    %v145 = vld [vmem:[%s143 + $0x8] sm:$0xff]
    %v146 = vlaneseq
    %v147 = vshrl.u32 %v146, 7
    %v148 = vsub.s32 0, %v147
    %v149 = vrot.slane %v57, %v148
    %v151 = vsel %vm68, %v142, 0
    %153 = vmatprep.subr.mxu0 0.0
    %154 = vmatpush1.msra.mxu0 %v144
    %155 = vmatprep.subr.mxu0 0.0
    %156 = vmatpush1.msra.mxu0 %v145
    %157 = vmatprep.subr.mxu0 0.0
    %158 = vmatpush1.msra.mxu0 0.0
    %159 = vmatprep.subr.mxu0 0.0
    %160 = vmatpush1.msra.mxu0 0.0
    %161 = vmatprep.subr.mxu0 0.0
    %162 = vmatpush1.msra.mxu0 0.0
    %163 = vmatprep.subr.mxu0 0.0
    %164 = vmatpush1.msra.mxu0 0.0
    %165 = vmatprep.subr.mxu0 0.0
    %166 = vmatpush1.msra.mxu0 0.0
    %167 = vmatprep.subr.mxu0 0.0
    %168 = vmatpush1.msra.mxu0 0.0
    %169 = vmatprep.subr.mxu0 0.0
    %170 = vmatpush1.msra.mxu0 0.0
    %171 = vmatprep.subr.mxu0 0.0
    %172 = vmatpush1.msra.mxu0 0.0
    %173 = vmatprep.subr.mxu0 0.0
    %174 = vmatpush1.msra.mxu0 0.0
    %175 = vmatprep.subr.mxu0 0.0
    %176 = vmatpush1.msra.mxu0 0.0
    %177 = vmatprep.subr.mxu0 0.0
    %178 = vmatpush1.msra.mxu0 0.0
    %179 = vmatprep.subr.mxu0 0.0
    %180 = vmatpush1.msra.mxu0 0.0
    %181 = vmatprep.subr.mxu0 0.0
    %182 = vmatpush1.msra.mxu0 0.0
    %183 = vmatprep.subr.mxu0 0.0
    %184 = vmatpush1.msra.mxu0 0.0
    %185 = vmatprep.subr.mxu0 0.0
    %186 = vmatpush1.msra.mxu0 0.0
    %187 = vmatprep.subr.mxu0 0.0
    %188 = vmatpush1.msra.mxu0 0.0
    %189 = vmatprep.subr.mxu0 0.0
    %190 = vmatpush1.msra.mxu0 0.0
    %191 = vmatprep.subr.mxu0 0.0
    %192 = vmatpush1.msra.mxu0 0.0
    %193 = vmatprep.subr.mxu0 0.0
    %194 = vmatpush1.msra.mxu0 0.0
    %195 = vmatprep.subr.mxu0 0.0
    %196 = vmatpush1.msra.mxu0 0.0
    %197 = vmatprep.subr.mxu0 0.0
    %198 = vmatpush1.msra.mxu0 0.0
    %199 = vmatprep.subr.mxu0 0.0
    %200 = vmatpush1.msra.mxu0 0.0
    %201 = vmatprep.subr.mxu0 0.0
    %202 = vmatpush1.msra.mxu0 0.0
    %203 = vmatprep.subr.mxu0 0.0
    %204 = vmatpush1.msra.mxu0 0.0
    %205 = vmatprep.subr.mxu0 0.0
    %206 = vmatpush1.msra.mxu0 0.0
    %207 = vmatprep.subr.mxu0 0.0
    %208 = vmatpush1.msra.mxu0 0.0
    %209 = vmatprep.subr.mxu0 0.0
    %210 = vmatpush1.msra.mxu0 0.0
    %211 = vmatprep.subr.mxu0 0.0
    %212 = vmatpush1.msra.mxu0 0.0
    %213 = vmatprep.subr.mxu0 0.0
    %214 = vmatpush1.msra.mxu0 0.0
    %215 = vmatprep.subr.mxu0 0.0
    %216 = vmatpush1.msra.mxu0 0.0
    %217 = vmatprep.mubr.f32.mxu0 0.0
    %218 = vmatmul.mubr.f32.gmra.mrb[0].mxu0 %v151
    %v219 = vpop.f32.mrb[0].mxu0
    %v220 = vadd.f32 %v149, %v219
    %v221 = vpop.f32.mrb[0].mxu0
    %222 = vdwg.mxu0
    %v223 = vsel %vm68, %v220, 0.0
    %v224 = vrot.slane %v223, 4
    %v225 = vadd.f32 %v223, %v224
    %v226 = vrot.slane %v225, 2
    %v227 = vadd.f32 %v225, %v226
    %v228 = vrot.slane %v227, 1
    %v229 = vadd.f32 %v227, %v228
    %v230 = vrcp.pop 8.0
    %v231 = vmul.f32 %v229, %v230
    %v232 = vmul.f32 %v220, %v220
    %v233 = vsel %vm68, %v232, 0.0
    %v234 = vrot.slane %v233, 4
    %v235 = vadd.f32 %v233, %v234
    %v236 = vrot.slane %v235, 2
    %v237 = vadd.f32 %v235, %v236
    %v238 = vrot.slane %v237, 1
    %v239 = vadd.f32 %v237, %v238
    %v240 = vmul.f32 %v239, %v230
    %v241 = vmul.f32 %v231, %v231
    %v242 = vsub.f32 %v240, %v241
    %v243 = vadd.f32 %v242, 1e-05
    %v244 = vrsqrt.pop %v243
    %v245 = vmul.f32 %v58, %v244
    %v246 = vmul.f32 %v231, %v245
    %v247 = vsub.f32 %v59, %v246
    %v248 = vlaneseq
    %v249 = vshrl.u32 %v248, 7
    %v250 = vsub.s32 0, %v249
    %v251 = vrot.slane %v245, %v250
    %v252 = vmul.f32 %v220, %v251
    %v253 = vlaneseq
    %v254 = vshrl.u32 %v253, 7
    %v255 = vsub.s32 0, %v254
    %v256 = vrot.slane %v247, %v255
    %v257 = vadd.f32 %v252, %v256
    %v258 = vld [vmem:[#allocation5] sm:$0xff]
    %v259 = vadd.f32 %v257, %v258
    %s260 = scalar_lea.vmem [#allocation7], 32
    %v261 = vld [vmem:[%s260] sm:$0xff]
    %v262 = vld [vmem:[%s260 + $0x8] sm:$0xff]
    %v263 = vlaneseq
    %v264 = vshrl.u32 %v263, 7
    %v265 = vsub.s32 0, %v264
    %v266 = vrot.slane %v60, %v265
    %v268 = vsel %vm68, %v259, 0
    %270 = vmatprep.subr.mxu0 0.0
    %271 = vmatpush1.msra.mxu0 %v261
    %272 = vmatprep.subr.mxu0 0.0
    %273 = vmatpush1.msra.mxu0 %v262
    %274 = vmatprep.subr.mxu0 0.0
    %275 = vmatpush1.msra.mxu0 0.0
    %276 = vmatprep.subr.mxu0 0.0
    %277 = vmatpush1.msra.mxu0 0.0
    %278 = vmatprep.subr.mxu0 0.0
    %279 = vmatpush1.msra.mxu0 0.0
    %280 = vmatprep.subr.mxu0 0.0
    %281 = vmatpush1.msra.mxu0 0.0
    %282 = vmatprep.subr.mxu0 0.0
    %283 = vmatpush1.msra.mxu0 0.0
    %284 = vmatprep.subr.mxu0 0.0
    %285 = vmatpush1.msra.mxu0 0.0
    %286 = vmatprep.subr.mxu0 0.0
    %287 = vmatpush1.msra.mxu0 0.0
    %288 = vmatprep.subr.mxu0 0.0
    %289 = vmatpush1.msra.mxu0 0.0
    %290 = vmatprep.subr.mxu0 0.0
    %291 = vmatpush1.msra.mxu0 0.0
    %292 = vmatprep.subr.mxu0 0.0
    %293 = vmatpush1.msra.mxu0 0.0
    %294 = vmatprep.subr.mxu0 0.0
    %295 = vmatpush1.msra.mxu0 0.0
    %296 = vmatprep.subr.mxu0 0.0
    %297 = vmatpush1.msra.mxu0 0.0
    %298 = vmatprep.subr.mxu0 0.0
    %299 = vmatpush1.msra.mxu0 0.0
    %300 = vmatprep.subr.mxu0 0.0
    %301 = vmatpush1.msra.mxu0 0.0
    %302 = vmatprep.subr.mxu0 0.0
    %303 = vmatpush1.msra.mxu0 0.0
    %304 = vmatprep.subr.mxu0 0.0
    %305 = vmatpush1.msra.mxu0 0.0
    %306 = vmatprep.subr.mxu0 0.0
    %307 = vmatpush1.msra.mxu0 0.0
    %308 = vmatprep.subr.mxu0 0.0
    %309 = vmatpush1.msra.mxu0 0.0
    %310 = vmatprep.subr.mxu0 0.0
    %311 = vmatpush1.msra.mxu0 0.0
    %312 = vmatprep.subr.mxu0 0.0
    %313 = vmatpush1.msra.mxu0 0.0
    %314 = vmatprep.subr.mxu0 0.0
    %315 = vmatpush1.msra.mxu0 0.0
    %316 = vmatprep.subr.mxu0 0.0
    %317 = vmatpush1.msra.mxu0 0.0
    %318 = vmatprep.subr.mxu0 0.0
    %319 = vmatpush1.msra.mxu0 0.0
    %320 = vmatprep.subr.mxu0 0.0
    %321 = vmatpush1.msra.mxu0 0.0
    %322 = vmatprep.subr.mxu0 0.0
    %323 = vmatpush1.msra.mxu0 0.0
    %324 = vmatprep.subr.mxu0 0.0
    %325 = vmatpush1.msra.mxu0 0.0
    %326 = vmatprep.subr.mxu0 0.0
    %327 = vmatpush1.msra.mxu0 0.0
    %328 = vmatprep.subr.mxu0 0.0
    %329 = vmatpush1.msra.mxu0 0.0
    %330 = vmatprep.subr.mxu0 0.0
    %331 = vmatpush1.msra.mxu0 0.0
    %332 = vmatprep.subr.mxu0 0.0
    %333 = vmatpush1.msra.mxu0 0.0
    %334 = vmatprep.mubr.f32.mxu0 0.0
    %335 = vmatmul.mubr.f32.gmra.mrb[0].mxu0 %v268
    %v336 = vpop.f32.mrb[0].mxu0
    %v337 = vadd.f32 %v266, %v336
    %v338 = vpop.f32.mrb[0].mxu0
    %339 = vdwg.mxu0
    %v340 = vmax.f32 %v337, 0.0
    %s341 = scalar_lea.vmem [#allocation7], 48
    %v342 = vld [vmem:[%s341] sm:$0xff]
    %v343 = vld [vmem:[%s341 + $0x8] sm:$0xff]
    %v344 = vlaneseq
    %v345 = vshrl.u32 %v344, 7
    %v346 = vsub.s32 0, %v345
    %v347 = vrot.slane %v61, %v346
    %v349 = vsel %vm68, %v340, 0
    %351 = vmatprep.subr.mxu0 0.0
    %352 = vmatpush1.msra.mxu0 %v342
    %353 = vmatprep.subr.mxu0 0.0
    %354 = vmatpush1.msra.mxu0 %v343
    %355 = vmatprep.subr.mxu0 0.0
    %356 = vmatpush1.msra.mxu0 0.0
    %357 = vmatprep.subr.mxu0 0.0
    %358 = vmatpush1.msra.mxu0 0.0
    %359 = vmatprep.subr.mxu0 0.0
    %360 = vmatpush1.msra.mxu0 0.0
    %361 = vmatprep.subr.mxu0 0.0
    %362 = vmatpush1.msra.mxu0 0.0
    %363 = vmatprep.subr.mxu0 0.0
    %364 = vmatpush1.msra.mxu0 0.0
    %365 = vmatprep.subr.mxu0 0.0
    %366 = vmatpush1.msra.mxu0 0.0
    %367 = vmatprep.subr.mxu0 0.0
    %368 = vmatpush1.msra.mxu0 0.0
    %369 = vmatprep.subr.mxu0 0.0
    %370 = vmatpush1.msra.mxu0 0.0
    %371 = vmatprep.subr.mxu0 0.0
    %372 = vmatpush1.msra.mxu0 0.0
    %373 = vmatprep.subr.mxu0 0.0
    %374 = vmatpush1.msra.mxu0 0.0
    %375 = vmatprep.subr.mxu0 0.0
    %376 = vmatpush1.msra.mxu0 0.0
    %377 = vmatprep.subr.mxu0 0.0
    %378 = vmatpush1.msra.mxu0 0.0
    %379 = vmatprep.subr.mxu0 0.0
    %380 = vmatpush1.msra.mxu0 0.0
    %381 = vmatprep.subr.mxu0 0.0
    %382 = vmatpush1.msra.mxu0 0.0
    %383 = vmatprep.subr.mxu0 0.0
    %384 = vmatpush1.msra.mxu0 0.0
    %385 = vmatprep.subr.mxu0 0.0
    %386 = vmatpush1.msra.mxu0 0.0
    %387 = vmatprep.subr.mxu0 0.0
    %388 = vmatpush1.msra.mxu0 0.0
    %389 = vmatprep.subr.mxu0 0.0
    %390 = vmatpush1.msra.mxu0 0.0
    %391 = vmatprep.subr.mxu0 0.0
    %392 = vmatpush1.msra.mxu0 0.0
    %393 = vmatprep.subr.mxu0 0.0
    %394 = vmatpush1.msra.mxu0 0.0
    %395 = vmatprep.subr.mxu0 0.0
    %396 = vmatpush1.msra.mxu0 0.0
    %397 = vmatprep.subr.mxu0 0.0
    %398 = vmatpush1.msra.mxu0 0.0
    %399 = vmatprep.subr.mxu0 0.0
    %400 = vmatpush1.msra.mxu0 0.0
    %401 = vmatprep.subr.mxu0 0.0
    %402 = vmatpush1.msra.mxu0 0.0
    %403 = vmatprep.subr.mxu0 0.0
    %404 = vmatpush1.msra.mxu0 0.0
    %405 = vmatprep.subr.mxu0 0.0
    %406 = vmatpush1.msra.mxu0 0.0
    %407 = vmatprep.subr.mxu0 0.0
    %408 = vmatpush1.msra.mxu0 0.0
    %409 = vmatprep.subr.mxu0 0.0
    %410 = vmatpush1.msra.mxu0 0.0
    %411 = vmatprep.subr.mxu0 0.0
    %412 = vmatpush1.msra.mxu0 0.0
    %413 = vmatprep.subr.mxu0 0.0
    %414 = vmatpush1.msra.mxu0 0.0
    %415 = vmatprep.mubr.f32.mxu0 0.0
    %416 = vmatmul.mubr.f32.gmra.mrb[0].mxu0 %v349
    %v417 = vpop.f32.mrb[0].mxu0
    %v418 = vadd.f32 %v347, %v417
    %v419 = vpop.f32.mrb[0].mxu0
    %420 = vdwg.mxu0
    %421 = vst.msk [vmem:[#allocation8] sm:$0xff] %vm68, %v418
    // Predicated region
    $region30: #{tpu_custom_call.1} parent=1 // pred_check
      _
    $region31: #{tpu_custom_call.1} parent=1 // pred_check_branch
      %423 = sbr.rel (0) target = $region33
    $region32: #{tpu_custom_call.1} parent=1 // pred_region
      %s425 = ssub.s32 128, 128
      %426 = vsyncadd [#allocation4], %s425
      %s428 = sshll.u32 [#allocation8], 4
      %s429 = int_to_ptr.vmem [resolvable:$true] %s428
      %431 = dma.vmem_to_hbm [thread:$0]  %s429, 128, %s4, [#allocation4]
    $region33: #{tpu_custom_call.1} parent=1 // pred_fallthru
      _
    // Predicated region
    $region34: #{tpu_custom_call.1} parent=1 // pred_check
      _
    $region35: #{tpu_custom_call.1} parent=1 // pred_check_branch
      %433 = sbr.rel (0) target = $region37
    $region36: #{tpu_custom_call.1} parent=1 // pred_region
      %434 = dma.done [#allocation4], 128
    $region37: #{tpu_custom_call.1} parent=1 // pred_fallthru
      _
    %435 = vsyncpa [#allocation3], 1
    %436 = vsyncpa [#allocation6], 1
    %437 = vsyncpa [#allocation4], 1

</llo_original>
